<compile_context>
chip_gen: v5e
topology: v5e:2x2
jax: 0.10.0
libtpu: 0.0.40
codegen_flags: <defaults>
</compile_context>

<pallas_src>
import math

import jax
import jax.numpy as jnp
from jax import lax
from jax.experimental import pallas as pl
from jax.experimental.pallas import tpu as pltpu

LANE = 128          # TPU lane width (last dim)
SUB = 8             # TPU sublane width (second-to-last dim)
MAX_BLOCK_B = 4096  # x+out tiles stay well under scoped VMEM on v5e/v6e/v7x


def _round_up(n, m):
    return ((n + m - 1) // m) * m


def _pad2d(a, shape):
    return jnp.pad(a, [(0, s - d) for d, s in zip(a.shape, shape)])


def prepare_sinusoidal_params(fourier_w, w1, b1, w2, b2):
    """One-time host-side layout plumbing (hoisted out of the per-step path).

    Returns lane-dense, pre-split, pre-scaled parameters:
      smalls : (8, 128)  row 0: 2*pi*fourier_w duplicated into [sin lanes | cos lanes]
                         row 1: phase (0 on sin lanes, pi/2 on cos lanes)
                         row 2: W1[0, :]  (the raw-x column of `feat`)
                         row 3: b1,  row 4: b2,  rows 5..7: zero
      w1sc   : (128, 128) rows 0..h-1 = W1 sin rows, rows h..2h-1 = W1 cos rows, rest 0
      w2     : (128, 128) W2 zero-padded
    Padded freq/phase lanes give sin(0) = 0, so padded lanes contribute exactly 0.
    """
    f32 = jnp.float32
    half_dim = fourier_w.shape[0]
    in1, D = w1.shape
    assert in1 == 2 * half_dim + 1, "W1 must have (2*half_dim + 1) input rows"
    # Small-embedding kernel: one lane group covers both K and N.
    assert 2 * half_dim <= LANE and D <= LANE and w2.shape == (D, D)

    fw = fourier_w.astype(f32) * (2.0 * math.pi)
    fw_dup = jnp.concatenate([fw, fw])                                   # (2*half_dim,)
    phase = jnp.concatenate([jnp.zeros((half_dim,), f32),
                             jnp.full((half_dim,), 0.5 * math.pi, f32)])

    smalls = jnp.zeros((SUB, LANE), f32)
    smalls = smalls.at[0, :2 * half_dim].set(fw_dup)
    smalls = smalls.at[1, :2 * half_dim].set(phase)
    smalls = smalls.at[2, :D].set(w1[0, :].astype(f32))
    smalls = smalls.at[3, :D].set(b1.astype(f32))
    smalls = smalls.at[4, :D].set(b2.astype(f32))

    w1sc = jnp.zeros((LANE, LANE), f32)
    w1sc = w1sc.at[:half_dim, :D].set(w1[1:1 + half_dim, :].astype(f32))           # sin
    w1sc = w1sc.at[half_dim:2 * half_dim, :D].set(w1[1 + half_dim:, :].astype(f32))  # cos

    w2p = _pad2d(w2.astype(f32), (LANE, LANE))
    return dict(smalls=smalls, w1sc=w1sc, w2=w2p, out_dim=D)


def sinusoidal_embedding_kernel(x_ref, smalls_ref, w1sc_ref, w2_ref, o_ref):
    # x_ref     : (Bt, 1)    raw timesteps (no host-side 128x replication)
    # smalls_ref: (8, 128)   packed small parameter rows (see prepare_sinusoidal_params)
    # w1sc_ref  : (128, 128) [W1_sin ; W1_cos] stacked along K, zero-padded
    # w2_ref    : (128, 128) W2 zero-padded
    smalls = smalls_ref[...]
    fw = smalls[0:1, :]
    phase = smalls[1:2, :]
    w1x = smalls[2:3, :]
    b1 = smalls[3:4, :]
    b2 = smalls[4:5, :]

    # lane broadcast once, in-kernel (VPU slots are idle here)
    xb = jnp.broadcast_to(x_ref[...], (x_ref.shape[0], LANE))

    # single EUP transcendental covers both sin lanes and cos lanes (phase trick)
    sc = jnp.sin(xb * fw + phase)

    h = xb * w1x                                                   # x * W1[0, :]
    h = h + jnp.dot(sc, w1sc_ref[...], preferred_element_type=jnp.float32)
    h = h + b1
    # exact erf GELU (matches torch.nn.GELU default)
    h = 0.5 * h * (1.0 + lax.erf(h * (1.0 / math.sqrt(2.0))))

    out = jnp.dot(h, w2_ref[...], preferred_element_type=jnp.float32) + b2
    o_ref[...] = out.astype(o_ref.dtype)


def sinusoidal_embedding(x, params, *, block_b=None):
    """x: (B,) float32 timesteps -> (B, sinusoidal_dim) float32.

    block_b=None collapses the grid to a single step (capped at 4096 rows).  On v7x,
    pass block_b = round_up(ceil(B/2), 8) to shard the batch over the 2 TensorCores.
    """
    f32 = jnp.float32
    B = x.shape[0]
    D = params["out_dim"]
    smalls, w1sc, w2p = params["smalls"], params["w1sc"], params["w2"]

    if block_b is None:
        block_b = MAX_BLOCK_B
    Bt = min(_round_up(B, SUB), _round_up(block_b, SUB))
    Bp = _round_up(B, Bt)
    grid = (Bp // Bt,)

    xp = jnp.pad(x.astype(f32), (0, Bp - B)).reshape(Bp, 1)

    def fixed(shape):
        # weights: single resident block, identical for every grid step
        return pl.BlockSpec(shape, lambda i: (0, 0))

    in_bytes = 4 * (xp.size + smalls.size + w1sc.size + w2p.size)
    out_bytes = 4 * Bp * LANE
    cost = pl.CostEstimate(
        flops=int(2 * 2 * Bp * LANE * LANE + 6 * Bp * LANE),
        transcendentals=int(2 * Bp * LANE),           # sin + erf per output lane
        bytes_accessed=int(in_bytes + out_bytes),
    )

    out = pl.pallas_call(
        sinusoidal_embedding_kernel,
        out_shape=jax.ShapeDtypeStruct((Bp, LANE), f32),
        grid=grid,
        in_specs=[pl.BlockSpec((Bt, 1), lambda i: (i, 0)),
                  fixed(smalls.shape), fixed(w1sc.shape), fixed(w2p.shape)],
        out_specs=pl.BlockSpec((Bt, LANE), lambda i: (i, 0)),
        compiler_params=pltpu.CompilerParams(dimension_semantics=("parallel",)),
        cost_estimate=cost,
    )(xp, smalls, w1sc, w2p)

    return out[:B, :D]


def _reference(x, fourier_w, w1, b1, w2, b2):
    # faithful pure-JAX mirror of the PyTorch module (erf GELU, torch op ordering)
    xc = x.reshape(-1, 1)
    freqs = xc * fourier_w.reshape(1, -1) * 2.0 * math.pi
    fouriered = jnp.concatenate([jnp.sin(freqs), jnp.cos(freqs)], axis=-1)
    feat = jnp.concatenate([xc, fouriered], axis=-1)
    h = feat @ w1 + b1
    h = jax.nn.gelu(h, approximate=False)
    return h @ w2 + b2


if __name__ == "__main__":
    # config: learned_sinusoidal_dim = 16, sinusoidal_dim = 32
    learned_sinusoidal_dim = 16
    sinusoidal_dim = 32
    half_dim = learned_sinusoidal_dim // 2
    B = 8

    key = jax.random.PRNGKey(0)
    k_x, k_fw, k_w1, k_b1, k_w2, k_b2 = jax.random.split(key, 6)

    # deterministic synthetic parameters (shapes from module __init__)
    fourier_w = jax.random.normal(k_fw, (half_dim,), dtype=jnp.float32)  # torch.randn(half_dim)
    in1 = learned_sinusoidal_dim + 1
    w1 = jax.random.normal(k_w1, (in1, sinusoidal_dim), dtype=jnp.float32) / math.sqrt(in1)
    b1 = jax.random.normal(k_b1, (sinusoidal_dim,), dtype=jnp.float32) * 0.01
    w2 = jax.random.normal(k_w2, (sinusoidal_dim, sinusoidal_dim), dtype=jnp.float32) / math.sqrt(sinusoidal_dim)
    b2 = jax.random.normal(k_b2, (sinusoidal_dim,), dtype=jnp.float32) * 0.01

    # example diffusion timesteps (B,)
    x = jax.random.uniform(k_x, (B,), dtype=jnp.float32) * 100.0

    # one-time parameter prep (hoisted out of the per-step path)
    params = prepare_sinusoidal_params(fourier_w, w1, b1, w2, b2)

    out = sinusoidal_embedding(x, params)
    out = jax.block_until_ready(out)

    ref = _reference(x, fourier_w, w1, b1, w2, b2)
    assert out.shape == (B, sinusoidal_dim)
    # 2*pi is folded into the fourier weights and cos(f) is computed as sin(f + pi/2);
    # both reassociate f32 ops, so allow a few ulps of the large sin/cos arguments.
    assert jnp.allclose(out, ref, atol=3e-3, rtol=2e-3), "mismatch vs pure-JAX reference"

    print("KERNEL_OK")
</pallas_src>

<mosaic_0001>
module attributes {stable_mosaic.version = 11 : i64} {
  func.func @sinusoidal_embedding_kernel(%arg0: i32, %arg1: memref<8x1xf32, #tpu.memory_space<vmem>>, %arg2: memref<8x128xf32, #tpu.memory_space<vmem>>, %arg3: memref<128x128xf32, #tpu.memory_space<vmem>>, %arg4: memref<128x128xf32, #tpu.memory_space<vmem>>, %arg5: memref<8x128xf32, #tpu.memory_space<vmem>>) attributes {dimension_semantics = [#tpu.dimension_semantics<parallel>], iteration_bounds = array<i64: 1>, scalar_prefetch = 0 : i64, scratch_operands = 0 : i64, tpu.core_type = #tpu.core_type<tc>, window_params = [{transform_indices = @transform_0, window_bounds = array<i64: 8, 1>}, {pipeline_mode = #tpu.pipeline_mode<synchronous>, transform_indices = @transform_1, window_bounds = array<i64: 8, 128>}, {pipeline_mode = #tpu.pipeline_mode<synchronous>, transform_indices = @transform_2, window_bounds = array<i64: 128, 128>}, {pipeline_mode = #tpu.pipeline_mode<synchronous>, transform_indices = @transform_3, window_bounds = array<i64: 128, 128>}, {transform_indices = @transform_4, window_bounds = array<i64: 8, 128>}]} {
    %c0 = arith.constant 0 : index
    %c0_0 = arith.constant 0 : index
    %0 = vector.load %arg2[%c0, %c0_0] : memref<8x128xf32, #tpu.memory_space<vmem>>, vector<8x128xf32>
    %1 = vector.extract_strided_slice %0 {offsets = [0, 0], sizes = [1, 128], strides = [1, 1]} : vector<8x128xf32> to vector<1x128xf32>
    %2 = vector.extract_strided_slice %0 {offsets = [1, 0], sizes = [1, 128], strides = [1, 1]} : vector<8x128xf32> to vector<1x128xf32>
    %3 = vector.extract_strided_slice %0 {offsets = [2, 0], sizes = [1, 128], strides = [1, 1]} : vector<8x128xf32> to vector<1x128xf32>
    %4 = vector.extract_strided_slice %0 {offsets = [3, 0], sizes = [1, 128], strides = [1, 1]} : vector<8x128xf32> to vector<1x128xf32>
    %5 = vector.extract_strided_slice %0 {offsets = [4, 0], sizes = [1, 128], strides = [1, 1]} : vector<8x128xf32> to vector<1x128xf32>
    %c0_1 = arith.constant 0 : index
    %c0_2 = arith.constant 0 : index
    %6 = vector.load %arg1[%c0_1, %c0_2] : memref<8x1xf32, #tpu.memory_space<vmem>>, vector<8x1xf32>
    %7 = vector.shape_cast %6 : vector<8x1xf32> to vector<8x1xf32>
    %8 = vector.broadcast %7 : vector<8x1xf32> to vector<8x128xf32>
    %9 = vector.broadcast %1 : vector<1x128xf32> to vector<8x128xf32>
    %10 = arith.mulf %8, %9 : vector<8x128xf32>
    %11 = vector.broadcast %2 : vector<1x128xf32> to vector<8x128xf32>
    %12 = arith.addf %10, %11 : vector<8x128xf32>
    %13 = math.sin %12 : vector<8x128xf32>
    %14 = vector.broadcast %3 : vector<1x128xf32> to vector<8x128xf32>
    %15 = arith.mulf %8, %14 : vector<8x128xf32>
    %c0_3 = arith.constant 0 : index
    %c0_4 = arith.constant 0 : index
    %16 = vector.load %arg3[%c0_3, %c0_4] : memref<128x128xf32, #tpu.memory_space<vmem>>, vector<128x128xf32>
    %cst = arith.constant dense<0.000000e+00> : vector<8x128xf32>
    %17 = tpu.matmul %13, %16, %cst {dimension_numbers = #tpu.dot_dimension_numbers<[1], [0], [0], [1], [0, 0, 1, 1], [], []>} : vector<8x128xf32>, vector<128x128xf32>, vector<8x128xf32> -> vector<8x128xf32>
    %18 = arith.addf %15, %17 : vector<8x128xf32>
    %19 = vector.broadcast %4 : vector<1x128xf32> to vector<8x128xf32>
    %20 = arith.addf %18, %19 : vector<8x128xf32>
    %cst_5 = arith.constant 5.000000e-01 : f32
    %21 = vector.broadcast %cst_5 : f32 to vector<8x128xf32>
    %22 = arith.mulf %21, %20 : vector<8x128xf32>
    %cst_6 = arith.constant 0.707106769 : f32
    %23 = vector.broadcast %cst_6 : f32 to vector<8x128xf32>
    %24 = arith.mulf %20, %23 : vector<8x128xf32>
    %25 = math.erf %24 : vector<8x128xf32>
    %cst_7 = arith.constant 1.000000e+00 : f32
    %26 = vector.broadcast %cst_7 : f32 to vector<8x128xf32>
    %27 = arith.addf %26, %25 : vector<8x128xf32>
    %28 = arith.mulf %22, %27 : vector<8x128xf32>
    %c0_8 = arith.constant 0 : index
    %c0_9 = arith.constant 0 : index
    %29 = vector.load %arg4[%c0_8, %c0_9] : memref<128x128xf32, #tpu.memory_space<vmem>>, vector<128x128xf32>
    %cst_10 = arith.constant dense<0.000000e+00> : vector<8x128xf32>
    %30 = tpu.matmul %28, %29, %cst_10 {dimension_numbers = #tpu.dot_dimension_numbers<[1], [0], [0], [1], [0, 0, 1, 1], [], []>} : vector<8x128xf32>, vector<128x128xf32>, vector<8x128xf32> -> vector<8x128xf32>
    %31 = vector.broadcast %5 : vector<1x128xf32> to vector<8x128xf32>
    %32 = arith.addf %30, %31 : vector<8x128xf32>
    %c0_11 = arith.constant 0 : index
    %c0_12 = arith.constant 0 : index
    %33 = vector.load %arg5[%c0_11, %c0_12] : memref<8x128xf32, #tpu.memory_space<vmem>>, vector<8x128xf32>
    tpu.vector_store %arg5[%c0_11, %c0_12], %32 {strides = array<i32>} : memref<8x128xf32, #tpu.memory_space<vmem>>, vector<8x128xf32>,
    return
  }
  func.func @transform_0(%arg0: i32) -> (i32, i32) {
    %c0_i32 = arith.constant 0 : i32
    %c0_i32_0 = arith.constant 0 : i32
    return %arg0, %c0_i32 : i32, i32
  }
  func.func @transform_1(%arg0: i32) -> (i32, i32) {
    %c0_i32 = arith.constant 0 : i32
    %c0_i32_0 = arith.constant 0 : i32
    %c0_i32_1 = arith.constant 0 : i32
    return %c0_i32, %c0_i32_0 : i32, i32
  }
  func.func @transform_2(%arg0: i32) -> (i32, i32) {
    %c0_i32 = arith.constant 0 : i32
    %c0_i32_0 = arith.constant 0 : i32
    %c0_i32_1 = arith.constant 0 : i32
    return %c0_i32, %c0_i32_0 : i32, i32
  }
  func.func @transform_3(%arg0: i32) -> (i32, i32) {
    %c0_i32 = arith.constant 0 : i32
    %c0_i32_0 = arith.constant 0 : i32
    %c0_i32_1 = arith.constant 0 : i32
    return %c0_i32, %c0_i32_0 : i32, i32
  }
  func.func @transform_4(%arg0: i32) -> (i32, i32) {
    %c0_i32 = arith.constant 0 : i32
    %c0_i32_0 = arith.constant 0 : i32
    return %arg0, %c0_i32 : i32, i32
  }
}

</mosaic_0001>

<llo_original>
// kernel: tpu_custom_call.1
$region0: #{tpu_custom_call.1}
  #allocation0 [shape = 'u32[]', space=smem, size = 0x4, offset = 0x4, fixed_abs, tag = 'smem constant byte address 0x4 - core index']
  #allocation1 [shape = 'u32[72,128]{1,0:T(1,128)}', space=vmem, size = 0x9000, scoped, tag = 'internal scratch']
  %s0 = inlined_call_operand.vmem [shape: f32[8,1], index: 0, kind: input, shape index: {}]
  %s1 = inlined_call_operand.vmem [shape: f32[8,128], index: 1, kind: input, shape index: {}]
  %s2 = inlined_call_operand.hbm [shape: f32[128,128], index: 2, kind: input, shape index: {}]
  %s3 = inlined_call_operand.hbm [shape: f32[128,128], index: 3, kind: input, shape index: {}]
  %s4 = inlined_call_operand.hbm [shape: f32[8,128], index: 4, kind: output, shape index: {}]
  %s5 = sld [smem:[#allocation0]]
  $region34: #{tpu_custom_call.1} parent=0
    _
  %s7 = ssub.s32 1, %s5
  %s8 = scalar_select 0, %s7, %s5
  $region1: #{tpu_custom_call.1} parent=0
    #allocation2 [shape = 'u8[65536]{0}', space=vmem, size = 0x10000, scoped, tag = 'input window, operand 2, single buffered']
    #allocation3 [shape = 's32[1]{0}', space=sflag, size = 0x4, scoped, tag = 'scoped memory for tpu_custom_call.1']
    #allocation4 [shape = 's32[1]{0}', space=sflag, size = 0x4, scoped, tag = 'scoped memory for tpu_custom_call.1']
    #allocation5 [shape = 'u8[65536]{0}', space=vmem, size = 0x10000, scoped, tag = 'input window, operand 3, single buffered']
    #allocation6 [shape = 's32[1]{0}', space=sflag, size = 0x4, scoped, tag = 'scoped memory for tpu_custom_call.1']
    #allocation7 [shape = 'u8[4096]{0}', space=vmem, size = 0x1000, scoped, tag = 'output window, operand 0, single buffered']
    %9 = vsyncpa [#allocation3], 0
    %10 = vsyncpa [#allocation6], 0
    %11 = vsyncpa [#allocation4], 0
    // Predicated region
    $region2: #{tpu_custom_call.1} parent=1 // pred_check
      _
    $region3: #{tpu_custom_call.1} parent=1 // pred_check_branch
      %13 = sbr.rel (0) target = $region5
    $region4: #{tpu_custom_call.1} parent=1 // pred_region
      _
    $region5: #{tpu_custom_call.1} parent=1 // pred_fallthru
      _
    // Predicated region
    $region6: #{tpu_custom_call.1} parent=1 // pred_check
      _
    $region7: #{tpu_custom_call.1} parent=1 // pred_check_branch
      %15 = sbr.rel (0) target = $region9
    $region8: #{tpu_custom_call.1} parent=1 // pred_region
      _
    $region9: #{tpu_custom_call.1} parent=1 // pred_fallthru
      _
    // Predicated region
    $region10: #{tpu_custom_call.1} parent=1 // pred_check
      _
    $region11: #{tpu_custom_call.1} parent=1 // pred_check_branch
      %17 = sbr.rel (0) target = $region13
    $region12: #{tpu_custom_call.1} parent=1 // pred_region
      %19 = vsyncadd [#allocation3], 0
      %s20 = sshll.u32 %s2, 4
      %s21 = int_to_ptr.hbm [resolvable:$true] %s20
      %s22 = sshll.u32 [#allocation2], 4
      %s23 = int_to_ptr.vmem [resolvable:$true] %s22
      %28 = dma.hbm_to_vmem [thread:$0]  %s21, 2048, %s23, [#allocation3], 128, 128, 8
    $region13: #{tpu_custom_call.1} parent=1 // pred_fallthru
      _
    // Predicated region
    $region14: #{tpu_custom_call.1} parent=1 // pred_check
      _
    $region15: #{tpu_custom_call.1} parent=1 // pred_check_branch
      %30 = sbr.rel (0) target = $region17
    $region16: #{tpu_custom_call.1} parent=1 // pred_region
      %32 = vsyncadd [#allocation6], 0
      %s33 = sshll.u32 %s3, 4
      %s34 = int_to_ptr.hbm [resolvable:$true] %s33
      %s35 = sshll.u32 [#allocation5], 4
      %s36 = int_to_ptr.vmem [resolvable:$true] %s35
      %41 = dma.hbm_to_vmem [thread:$0]  %s34, 2048, %s36, [#allocation6], 128, 128, 8
    $region17: #{tpu_custom_call.1} parent=1 // pred_fallthru
      _
    // Predicated region
    $region18: #{tpu_custom_call.1} parent=1 // pred_check
      _
    $region19: #{tpu_custom_call.1} parent=1 // pred_check_branch
      %43 = sbr.rel (0) target = $region21
    $region20: #{tpu_custom_call.1} parent=1 // pred_region
      %45 = dma.done [#allocation3], 2048
    $region21: #{tpu_custom_call.1} parent=1 // pred_fallthru
      _
    // Predicated region
    $region22: #{tpu_custom_call.1} parent=1 // pred_check
      _
    $region23: #{tpu_custom_call.1} parent=1 // pred_check_branch
      %47 = sbr.rel (0) target = $region25
    $region24: #{tpu_custom_call.1} parent=1 // pred_region
      %49 = dma.done [#allocation6], 2048
    $region25: #{tpu_custom_call.1} parent=1 // pred_fallthru
      _
    %v50 = vld [vmem:[%s1] sm:$0xff]
    %v51 = vld [vmem:[%s0] sm:$0xff]
    %53 = vset.pattern.permute.xlu0 0
    %54 = vperm.xlu0 %53, %v51
    %v55 = vpop.permute.xlu0 %54
    %v57 = vperm.slane %v50, 0
    %v58 = vmul.f32 %v55, %v57
    %v59 = vperm.slane %v50, 1
    %v60 = vadd.f32 %v58, %v59
    %v61 = vand.u32 2147483647, %v60
    %vm62 = vcmp.le.f32.partialorder %v61, 0.7853982
    %vm63 = vcmp.lt.s32.totalorder %v60, 0
    %v64 = vand.u32 %v60, 2139095040
    %v65 = vshrl.u32 %v64, 23
    %v66 = vsub.s32 %v65, 127
    %v67 = vand.u32 2147483647, %v60
    %v68 = vand.u32 %v67, 8388607
    %v69 = vor.u32 %v68, 8388608
    %v70 = vsub.s32 0, %v69
    %v71 = vadd.s32 %v66, 1
    %vm72 = vcmp.gt.s32.totalorder %v71, 0
    %v73 = vsel %vm72, %v71, 0
    %v74 = vshrl.u32 %v73, 5
    %v75 = vand.u32 %v73, 31
    %v76 = vsub.s32 32, %v75
    %v77 = vshrl.u32 683565275, %v76
    %v78 = vshll.u32 683565275, %v75
    %v79 = vshrl.u32 2475754826, %v76
    %v80 = vor.u32 %v78, %v79
    %v81 = vshll.u32 2475754826, %v75
    %v82 = vshrl.u32 2131351028, %v76
    %v83 = vor.u32 %v81, %v82
    %v84 = vshll.u32 2131351028, %v75
    %v85 = vshrl.u32 2102212464, %v76
    %v86 = vor.u32 %v84, %v85
    %v87 = vshll.u32 2102212464, %v75
    %v88 = vshrl.u32 920167782, %v76
    %v89 = vor.u32 %v87, %v88
    %v90 = vshll.u32 920167782, %v75
    %v91 = vshrl.u32 1326507024, %v76
    %v92 = vor.u32 %v90, %v91
    %vm93 = vcmp.lt.s32.totalorder %v74, 1
    %vm94 = vcmp.lt.s32.totalorder %v74, 2
    %vm95 = vcmp.lt.s32.totalorder %v74, 3
    %vm96 = vcmp.lt.s32.totalorder %v74, 4
    %v97 = vsel %vm93, %v77, %v80
    %v98 = vsel %vm96, %v86, 2102212464
    %v99 = vsel %vm95, %v83, %v98
    %v100 = vsel %vm94, %v97, %v99
    %v101 = vsel %vm93, %v80, %v83
    %v102 = vsel %vm96, %v89, 920167782
    %v103 = vsel %vm95, %v86, %v102
    %v104 = vsel %vm94, %v101, %v103
    %v105 = vsel %vm93, %v83, %v86
    %v106 = vsel %vm96, %v92, 1326507024
    %v107 = vsel %vm95, %v89, %v106
    %v108 = vsel %vm94, %v105, %v107
    %v109 = vshll.u32 %v69, 8
    %v110 = vand.u32 %v109, 65535
    %v111 = vshrl.u32 %v109, 16
    %v112 = vand.u32 %v108, 65535
    %v113 = vshrl.u32 %v108, 16
    %v114 = vmul.u32 %v110, %v112
    %v115 = vmul.u32 %v110, %v113
    %v116 = vmul.u32 %v111, %v112
    %v117 = vmul.u32 %v111, %v113
    %v118 = vshll.u32 %v115, 16
    %v119 = vshrl.u32 %v115, 16
    %v120 = vshll.u32 %v116, 16
    %v121 = vshrl.u32 %v116, 16
    %vm122 = vc.u32 %v114, %v118
    %v123 = vsel %vm122, 1, 0
    %v124 = vadd.s32 %v114, %v118
    %v125 = vadd.s32 %v117, %v123
    %vm126 = vc.u32 %v124, %v120
    %v127 = vsel %vm126, 1, 0
    %v128 = vadd.s32 %v124, %v120
    %v129 = vadd.s32 %v125, %v127
    %v130 = vadd.s32 %v129, %v119
    %v131 = vadd.s32 %v130, %v121
    %v132 = vand.u32 %v109, 65535
    %v133 = vshrl.u32 %v109, 16
    %v134 = vand.u32 %v104, 65535
    %v135 = vshrl.u32 %v104, 16
    %v136 = vmul.u32 %v132, %v134
    %v137 = vmul.u32 %v132, %v135
    %v138 = vmul.u32 %v133, %v134
    %v139 = vmul.u32 %v133, %v135
    %v140 = vshll.u32 %v137, 16
    %v141 = vshrl.u32 %v137, 16
    %v142 = vshll.u32 %v138, 16
    %v143 = vshrl.u32 %v138, 16
    %vm144 = vc.u32 %v136, %v140
    %v145 = vsel %vm144, 1, 0
    %v146 = vadd.s32 %v136, %v140
    %v147 = vadd.s32 %v139, %v145
    %vm148 = vc.u32 %v146, %v142
    %v149 = vsel %vm148, 1, 0
    %v150 = vadd.s32 %v146, %v142
    %v151 = vadd.s32 %v147, %v149
    %v152 = vadd.s32 %v151, %v141
    %v153 = vadd.s32 %v152, %v143
    %v154 = vmul.u32 %v109, %v100
    %v155 = vadd.s32 %v131, %v150
    %vm156 = vc.u32 %v131, %v150
    %v157 = vadd.s32 %v153, 1
    %v158 = vsel %vm156, %v157, %v153
    %v159 = vadd.s32 %v154, %v158
    %v160 = vadd.s32 %v159, 536870912
    %v161 = vshrl.u32 %v160, 30
    %v162 = vshll.u32 %v161, 30
    %v163 = vsub.s32 %v159, %v162
    %vm164 = vcmp.lt.s32.totalorder %v163, 0
    %v165 = vsub.s32 0, %v163
    %v166 = vsel %vm164, %v165, %v163
    %v167 = vclz %v166
    %v168 = vsub.s32 %v167, 2
    %vm169 = vcmp.gt.s32.totalorder 0, %v168
    %v170 = vsel %vm169, 0, %v168
    %v171 = vsub.s32 32, %v170
    %v172 = vshll.u32 %v163, %v170
    %v173 = vshrl.u32 %v155, %v171
    %v174 = vor.u32 %v172, %v173
    %v175 = vsub.s32 4294967266, %v170
    %v176 = vadd.s32 %v175, 127
    %v177 = vshll.u32 %v176, 23
    %v178 = vor.u32 4788187, %v177
    %v179 = vand.u32 2147483647, %v178
    %v181 = vcvt.s32.f32 %v174
    %v182 = vmul.f32 %v181, %v179
    %v183 = vxor.u32 %v182, 2147483648
    %v184 = vsel %vm63, %v183, %v182
    %v185 = vsub.s32 4, %v161
    %v186 = vsel %vm63, %v185, %v161
    %v187 = vsel %vm62, %v60, %v184
    %v188 = vsel %vm62, 0, %v186
    %v189 = vmul.f32 %v187, %v187
    %v190 = vmul.f32 %v189, -0.001358992
    %v191 = vadd.f32 %v190, 0.041655596
    %v192 = vmul.f32 %v189, %v191
    %v193 = vadd.f32 %v192, -0.4999988
    %v194 = vmul.f32 %v189, %v193
    %v195 = vadd.f32 1.0, %v194
    %v196 = vmul.f32 %v187, %v187
    %v197 = vmul.f32 %v196, -0.00019511016
    %v198 = vadd.f32 %v197, 0.008332121
    %v199 = vmul.f32 %v196, %v198
    %v200 = vadd.f32 %v199, -0.16666654
    %v201 = vmul.f32 %v196, %v200
    %v202 = vadd.f32 %v201, 1.0
    %v203 = vmul.f32 %v202, %v187
    %vm204 = vweird.f32 %v60
    %v205 = vadd.s32 %v188, 3
    %v206 = vand.u32 %v205, 3
    %vm207 = vcmp.lt.s32.totalorder %v206, 2
    %vm208 = vcmp.eq.s32.totalorder %v206, 0
    %v209 = vxor.u32 %v203, 2147483648
    %v210 = vsel %vm208, %v195, %v209
    %vm211 = vcmp.eq.s32.totalorder %v206, 2
    %v212 = vxor.u32 %v195, 2147483648
    %v213 = vsel %vm211, %v212, %v203
    %v214 = vsel %vm207, %v210, %v213
    %v215 = vsel %vm204, nan, %v214
    %v216 = vperm.slane %v50, 2
    %v217 = vmul.f32 %v55, %v216
    %v218 = vld [vmem:[#allocation2] sm:$0xff]
    %v219 = vld [vmem:[#allocation2 + $0x8] sm:$0xff]
    %v220 = vld [vmem:[#allocation2 + $0x10] sm:$0xff]
    %v221 = vld [vmem:[#allocation2 + $0x18] sm:$0xff]
    %v222 = vld [vmem:[#allocation2 + $0x20] sm:$0xff]
    %v223 = vld [vmem:[#allocation2 + $0x28] sm:$0xff]
    %v224 = vld [vmem:[#allocation2 + $0x30] sm:$0xff]
    %v225 = vld [vmem:[#allocation2 + $0x38] sm:$0xff]
    %v226 = vld [vmem:[#allocation2 + $0x40] sm:$0xff]
    %v227 = vld [vmem:[#allocation2 + $0x48] sm:$0xff]
    %v228 = vld [vmem:[#allocation2 + $0x50] sm:$0xff]
    %v229 = vld [vmem:[#allocation2 + $0x58] sm:$0xff]
    %v230 = vld [vmem:[#allocation2 + $0x60] sm:$0xff]
    %v231 = vld [vmem:[#allocation2 + $0x68] sm:$0xff]
    %v232 = vld [vmem:[#allocation2 + $0x70] sm:$0xff]
    %v233 = vld [vmem:[#allocation2 + $0x78] sm:$0xff]
    %234 = vmatpush.msra.mxu0 %v233
    %235 = vmatpush.msra.mxu0 %v232
    %236 = vmatpush.msra.mxu0 %v231
    %237 = vmatpush.msra.mxu0 %v230
    %238 = vmatpush.msra.mxu0 %v229
    %239 = vmatpush.msra.mxu0 %v228
    %240 = vmatpush.msra.mxu0 %v227
    %241 = vmatpush.msra.mxu0 %v226
    %242 = vmatpush.msra.mxu0 %v225
    %243 = vmatpush.msra.mxu0 %v224
    %244 = vmatpush.msra.mxu0 %v223
    %245 = vmatpush.msra.mxu0 %v222
    %246 = vmatpush.msra.mxu0 %v221
    %247 = vmatpush.msra.mxu0 %v220
    %248 = vmatpush.msra.mxu0 %v219
    %249 = vmatpush.msra.mxu0 %v218
    %250 = vmatmul.f32.gmra.mxu0 %v215
    %v251 = vpop.f32.mrf.mxu0
    %v252 = vadd.f32 0.0, %v251
    %253 = vdwg.mxu0
    %v254 = vadd.f32 %v217, %v252
    %v255 = vperm.slane %v50, 3
    %v256 = vadd.f32 %v254, %v255
    %v257 = vmul.f32 %v256, 0.5
    %v258 = vmul.f32 %v256, 0.70710677
    %v259 = vmul.f32 %v258, %v258
    %v260 = vmin.f32 16.0, %v259
    %v261 = vmul.f32 %v260, 2.1237322e-06
    %v262 = vadd.f32 %v261, 0.00028619796
    %v263 = vmul.f32 %v260, %v262
    %v264 = vadd.f32 %v263, 0.0036580483
    %v265 = vmul.f32 %v260, %v264
    %v266 = vadd.f32 %v265, 0.05243302
    %v267 = vmul.f32 %v260, %v266
    %v268 = vadd.f32 %v267, 0.18741608
    %v269 = vmul.f32 %v260, %v268
    %v270 = vadd.f32 %v269, 1.1283791
    %v271 = vmul.f32 %v258, %v270
    %v272 = vmul.f32 %v260, 3.8918573e-05
    %v273 = vadd.f32 %v272, 0.001143296
    %v274 = vmul.f32 %v260, %v273
    %v275 = vadd.f32 %v274, 0.014752088
    %v276 = vmul.f32 %v260, %v275
    %v277 = vadd.f32 %v276, 0.112945676
    %v278 = vmul.f32 %v260, %v277
    %v279 = vadd.f32 %v278, 0.4994258
    %v280 = vmul.f32 %v260, %v279
    %v281 = vadd.f32 %v280, 1.0
    %v282 = vrcp.pop %v281
    %v283 = vmul.f32 %v281, %v282
    %v284 = vsub.f32 1.0, %v283
    %v285 = vmul.f32 %v282, %v284
    %v286 = vadd.f32 %v282, %v285
    %vm287 = vweird.f32 %v281
    %vm288 = vweird.f32 %v282
    %vm289 = vmor %vm287, %vm288
    %v290 = vsel %vm289, %v282, %v286
    %v291 = vand.u32 2147483647, %v281
    %vm292 = vcmp.eq.f32.partialorder %v291, 8.507059e+37
    %v293 = vand.u32 %v281, 2147483648
    %v294 = vor.u32 1.1754944e-38, %v293
    %v295 = vsel %vm292, %v294, %v290
    %v296 = vmul.f32 %v271, %v295
    %v297 = vmin.f32 %v296, 1.0
    %v298 = vmax.f32 %v297, -1.0
    %v299 = vadd.f32 %v298, 1.0
    %v300 = vmul.f32 %v257, %v299
    %v301 = vld [vmem:[#allocation5] sm:$0xff]
    %v302 = vld [vmem:[#allocation5 + $0x8] sm:$0xff]
    %v303 = vld [vmem:[#allocation5 + $0x10] sm:$0xff]
    %v304 = vld [vmem:[#allocation5 + $0x18] sm:$0xff]
    %v305 = vld [vmem:[#allocation5 + $0x20] sm:$0xff]
    %v306 = vld [vmem:[#allocation5 + $0x28] sm:$0xff]
    %v307 = vld [vmem:[#allocation5 + $0x30] sm:$0xff]
    %v308 = vld [vmem:[#allocation5 + $0x38] sm:$0xff]
    %v309 = vld [vmem:[#allocation5 + $0x40] sm:$0xff]
    %v310 = vld [vmem:[#allocation5 + $0x48] sm:$0xff]
    %v311 = vld [vmem:[#allocation5 + $0x50] sm:$0xff]
    %v312 = vld [vmem:[#allocation5 + $0x58] sm:$0xff]
    %v313 = vld [vmem:[#allocation5 + $0x60] sm:$0xff]
    %v314 = vld [vmem:[#allocation5 + $0x68] sm:$0xff]
    %v315 = vld [vmem:[#allocation5 + $0x70] sm:$0xff]
    %v316 = vld [vmem:[#allocation5 + $0x78] sm:$0xff]
    %v317 = vperm.slane %v50, 4
    %318 = vmatpush.msra.mxu0 %v316
    %319 = vmatpush.msra.mxu0 %v315
    %320 = vmatpush.msra.mxu0 %v314
    %321 = vmatpush.msra.mxu0 %v313
    %322 = vmatpush.msra.mxu0 %v312
    %323 = vmatpush.msra.mxu0 %v311
    %324 = vmatpush.msra.mxu0 %v310
    %325 = vmatpush.msra.mxu0 %v309
    %326 = vmatpush.msra.mxu0 %v308
    %327 = vmatpush.msra.mxu0 %v307
    %328 = vmatpush.msra.mxu0 %v306
    %329 = vmatpush.msra.mxu0 %v305
    %330 = vmatpush.msra.mxu0 %v304
    %331 = vmatpush.msra.mxu0 %v303
    %332 = vmatpush.msra.mxu0 %v302
    %333 = vmatpush.msra.mxu0 %v301
    %334 = vmatmul.f32.gmra.mxu0 %v300
    %v335 = vpop.f32.mrf.mxu0
    %v336 = vadd.f32 %v317, %v335
    %337 = vdwg.mxu0
    %338 = vst [vmem:[#allocation7] sm:$0xff] %v336
    // Predicated region
    $region26: #{tpu_custom_call.1} parent=1 // pred_check
      _
    $region27: #{tpu_custom_call.1} parent=1 // pred_check_branch
      %340 = sbr.rel (0) target = $region29
    $region28: #{tpu_custom_call.1} parent=1 // pred_region
      %342 = vsyncadd [#allocation4], 0
      %s344 = sshll.u32 [#allocation7], 4
      %s345 = int_to_ptr.vmem [resolvable:$true] %s344
      %s346 = sshll.u32 %s4, 4
      %s347 = int_to_ptr.hbm [resolvable:$true] %s346
      %349 = dma.vmem_to_hbm [thread:$0]  %s345, 128, %s347, [#allocation4]
    $region29: #{tpu_custom_call.1} parent=1 // pred_fallthru
      _
    // Predicated region
    $region30: #{tpu_custom_call.1} parent=1 // pred_check
      _
    $region31: #{tpu_custom_call.1} parent=1 // pred_check_branch
      %351 = sbr.rel (0) target = $region33
    $region32: #{tpu_custom_call.1} parent=1 // pred_region
      %353 = dma.done [#allocation4], 128
    $region33: #{tpu_custom_call.1} parent=1 // pred_fallthru
      _
    %354 = vsyncpa [#allocation3], 1
    %355 = vsyncpa [#allocation6], 1
    %356 = vsyncpa [#allocation4], 1

</llo_original>
